<compile_context>
chip_gen: v6e
topology: v6e:2x2x1
jax: 0.10.0
libtpu: 0.0.40
codegen_flags: <defaults>
</compile_context>

<pallas_src>
import jax
import jax.numpy as jnp
from jax import lax
from jax.experimental import pallas as pl
from jax.experimental.pallas import tpu as pltpu

NEG_INF = -1e30


def _head_kernel(x_ref, m_ref, wv_ref, bias_ref, o_ref):
    """Fused causal single-head attention; batch folded into sublanes.

    x_ref   : (B*T, C)    bf16
    m_ref   : (C, C)      bf16  fused (Wq * hs^-0.5) @ Wk^T
    wv_ref  : (C, hs)     bf16
    bias_ref: (B*T, B*T)  f32   additive block-diagonal causal mask (0 / -1e30)
    o_ref   : (B*T, hs)   f32
    """
    x = x_ref[...]                                               # bf16 (BT, C)

    # scores = (x @ Wq_s) @ (x @ Wk)^T == (x @ M) @ x^T  (bf16 MXU, f32 acc)
    a = jnp.dot(x, m_ref[...], preferred_element_type=jnp.float32)       # (BT, C)
    s = lax.dot_general(a.astype(jnp.bfloat16), x,
                        (((1,), (1,)), ((), ())),
                        preferred_element_type=jnp.float32)              # (BT, BT)

    # precomputed additive mask: no iota / div / mod / compare / select in-kernel
    s = s + bias_ref[...]

    # softmax in f32 (v5e-safe); reciprocal goes to the otherwise-idle EUP slot
    mrow = jnp.max(s, axis=-1, keepdims=True)
    e = jnp.exp(s - mrow)
    p = e * pl.reciprocal(jnp.sum(e, axis=-1, keepdims=True), approx=True)

    # dropout(p) is identity in this deterministic forward pass
    v = jnp.dot(x, wv_ref[...], preferred_element_type=jnp.float32)      # (BT, hs)
    o_ref[...] = jnp.dot(p.astype(jnp.bfloat16), v.astype(jnp.bfloat16),
                         preferred_element_type=jnp.float32)             # (BT, hs)


def prepare_head_constants(wq, wk, wv, batch, seq):
    """Weight-only / shape-only prep, hoisted out of the per-call path."""
    hs = wq.shape[1]
    wq32 = wq.astype(jnp.float32)
    wk32 = wk.astype(jnp.float32)
    # fold the k.shape[-1]**-0.5 score scale into Wq and fuse Wq/Wk -> (C, C)
    m_fused = ((wq32 * (float(hs) ** -0.5)) @ wk32.T).astype(jnp.bfloat16)
    wv_b = wv.astype(jnp.bfloat16)

    # block-diagonal (per batch element) causal additive bias
    bt = batch * seq
    r = jnp.arange(bt, dtype=jnp.int32)
    same_b = (r[:, None] // seq) == (r[None, :] // seq)
    causal = (r[None, :] % seq) <= (r[:, None] % seq)
    bias = jnp.where(same_b & causal, 0.0, NEG_INF).astype(jnp.float32)
    return m_fused, wv_b, bias


@jax.jit
def head_apply(x, m_fused, wv_b, bias):
    """Head.forward(x) given pre-fused constants.  x: (B, T, C) -> (B, T, hs)."""
    B, T, C = x.shape
    hs = wv_b.shape[1]
    x2d = x.reshape(B * T, C).astype(jnp.bfloat16)   # fuses under this jit

    vmem = pl.BlockSpec(memory_space=pltpu.MemorySpace.VMEM)
    out = pl.pallas_call(
        _head_kernel,
        out_shape=jax.ShapeDtypeStruct((B * T, hs), jnp.float32),
        in_specs=[vmem, vmem, vmem, vmem],
        out_specs=vmem,
    )(x2d, m_fused, wv_b, bias)

    return out.reshape(B, T, hs)


def head_forward(x, wq, wk, wv):
    """Convenience one-shot API matching the PyTorch module signature."""
    B, T, _ = x.shape
    m_fused, wv_b, bias = prepare_head_constants(wq, wk, wv, B, T)
    return head_apply(x, m_fused, wv_b, bias)


# ----------------------------------------------------------------------------
# Pure-JAX reference (mirrors the PyTorch Head.forward exactly)
# ----------------------------------------------------------------------------

def _ref_head(x, wq, wk, wv):
    B, T, C = x.shape
    hs = wq.shape[1]
    k = x @ wk
    q = x @ wq
    v = x @ wv
    wei = q @ jnp.swapaxes(k, -2, -1) * (float(hs) ** -0.5)
    tril = jnp.tril(jnp.ones((T, T), jnp.float32))
    wei = jnp.where(tril[None] == 0, -jnp.inf, wei)
    wei = jax.nn.softmax(wei, axis=-1)
    return wei @ v


# ----------------------------------------------------------------------------
# Main
# ----------------------------------------------------------------------------

if __name__ == "__main__":
    head_size = 8
    n_embd = 32
    block_size = 8
    dropout = 0.0          # identity in this deterministic forward
    B, T = 2, block_size

    key = jax.random.PRNGKey(0)
    kx, kq, kk, kv = jax.random.split(key, 4)
    x = jax.random.normal(kx, (B, T, n_embd), jnp.float32)
    wq = 0.1 * jax.random.normal(kq, (n_embd, head_size), jnp.float32)
    wk = 0.1 * jax.random.normal(kk, (n_embd, head_size), jnp.float32)
    wv = 0.1 * jax.random.normal(kv, (n_embd, head_size), jnp.float32)

    # one-time weight/mask prep (hoisted out of the per-call jitted path)
    m_fused, wv_b, bias = prepare_head_constants(wq, wk, wv, B, T)

    out = jax.block_until_ready(head_apply(x, m_fused, wv_b, bias))
    assert out.shape == (B, T, head_size)

    ref = jax.block_until_ready(_ref_head(x, wq, wk, wv))
    # bf16 MXU operands + approx reciprocal -> slightly looser tolerance
    if not jnp.allclose(out, ref, rtol=2e-2, atol=2e-2):
        raise AssertionError("Pallas Head output mismatch vs reference")

    print("KERNEL_OK")
</pallas_src>

<mosaic_0001>
module attributes {stable_mosaic.version = 11 : i64} {
  func.func @_head_kernel(%arg0: memref<16x32xbf16, #tpu.memory_space<vmem>>, %arg1: memref<32x32xbf16, #tpu.memory_space<vmem>>, %arg2: memref<32x8xbf16, #tpu.memory_space<vmem>>, %arg3: memref<16x16xf32, #tpu.memory_space<vmem>>, %arg4: memref<16x8xf32, #tpu.memory_space<vmem>>) attributes {dimension_semantics = [], scalar_prefetch = 0 : i64, scratch_operands = 0 : i64, tpu.core_type = #tpu.core_type<tc>} {
    %c0 = arith.constant 0 : index
    %c0_0 = arith.constant 0 : index
    %0 = vector.load %arg0[%c0, %c0_0] : memref<16x32xbf16, #tpu.memory_space<vmem>>, vector<16x32xbf16>
    %c0_1 = arith.constant 0 : index
    %c0_2 = arith.constant 0 : index
    %1 = vector.load %arg1[%c0_1, %c0_2] : memref<32x32xbf16, #tpu.memory_space<vmem>>, vector<32x32xbf16>
    %cst = arith.constant dense<0.000000e+00> : vector<16x32xf32>
    %2 = tpu.matmul %0, %1, %cst {dimension_numbers = #tpu.dot_dimension_numbers<[1], [0], [0], [1], [0, 0, 1, 1], [], []>} : vector<16x32xbf16>, vector<32x32xbf16>, vector<16x32xf32> -> vector<16x32xf32>
    %3 = arith.truncf %2 : vector<16x32xf32> to vector<16x32xbf16>
    %cst_3 = arith.constant dense<0.000000e+00> : vector<16x16xf32>
    %4 = tpu.matmul %3, %0, %cst_3 {dimension_numbers = #tpu.dot_dimension_numbers<[1], [1], [0], [0], [0, 0, 1, 0], [], []>} : vector<16x32xbf16>, vector<16x32xbf16>, vector<16x16xf32> -> vector<16x16xf32>
    %c0_4 = arith.constant 0 : index
    %c0_5 = arith.constant 0 : index
    %5 = vector.load %arg3[%c0_4, %c0_5] : memref<16x16xf32, #tpu.memory_space<vmem>>, vector<16x16xf32>
    %6 = arith.addf %4, %5 : vector<16x16xf32>
    %cst_6 = arith.constant dense<0xFF800000> : vector<16xf32>
    %7 = vector.multi_reduction <maximumf>, %6, %cst_6 [1] : vector<16x16xf32> to vector<16xf32>
    %8 = vector.shape_cast %7 : vector<16xf32> to vector<16x1xf32>
    %9 = vector.broadcast %8 : vector<16x1xf32> to vector<16x16xf32>
    %10 = arith.subf %6, %9 : vector<16x16xf32>
    %11 = math.exp %10 : vector<16x16xf32>
    %cst_7 = arith.constant dense<0.000000e+00> : vector<16xf32>
    %12 = vector.multi_reduction <add>, %11, %cst_7 [1] : vector<16x16xf32> to vector<16xf32>
    %13 = vector.shape_cast %12 : vector<16xf32> to vector<16x1xf32>
    %14 = tpu.reciprocal %13 {approx = true} : vector<16x1xf32> -> vector<16x1xf32>
    %15 = vector.broadcast %14 : vector<16x1xf32> to vector<16x16xf32>
    %16 = arith.mulf %11, %15 : vector<16x16xf32>
    %c0_8 = arith.constant 0 : index
    %c0_9 = arith.constant 0 : index
    %17 = vector.load %arg2[%c0_8, %c0_9] : memref<32x8xbf16, #tpu.memory_space<vmem>>, vector<32x8xbf16>
    %cst_10 = arith.constant dense<0.000000e+00> : vector<16x8xf32>
    %18 = tpu.matmul %0, %17, %cst_10 {dimension_numbers = #tpu.dot_dimension_numbers<[1], [0], [0], [1], [0, 0, 1, 1], [], []>} : vector<16x32xbf16>, vector<32x8xbf16>, vector<16x8xf32> -> vector<16x8xf32>
    %19 = arith.truncf %16 : vector<16x16xf32> to vector<16x16xbf16>
    %20 = arith.truncf %18 : vector<16x8xf32> to vector<16x8xbf16>
    %cst_11 = arith.constant dense<0.000000e+00> : vector<16x8xf32>
    %21 = tpu.matmul %19, %20, %cst_11 {dimension_numbers = #tpu.dot_dimension_numbers<[1], [0], [0], [1], [0, 0, 1, 1], [], []>} : vector<16x16xbf16>, vector<16x8xbf16>, vector<16x8xf32> -> vector<16x8xf32>
    %c0_12 = arith.constant 0 : index
    %c0_13 = arith.constant 0 : index
    %22 = vector.load %arg4[%c0_12, %c0_13] : memref<16x8xf32, #tpu.memory_space<vmem>>, vector<16x8xf32>
    tpu.vector_store %arg4[%c0_12, %c0_13], %21 {strides = array<i32>} : memref<16x8xf32, #tpu.memory_space<vmem>>, vector<16x8xf32>,
    return
  }
}

</mosaic_0001>

<llo_original>
// kernel: head_apply.1
$region0: #{head_apply.1}
  #allocation0 [shape = 'u32[]', space=smem, size = 0x4, offset = 0x4, fixed_abs, tag = 'smem constant byte address 0x4 - core index']
  #allocation1 [shape = 'u32[144,128]{1,0:T(1,128)}', space=vmem, size = 0x12000, scoped, tag = 'internal scratch']
  %s0 = inlined_call_operand.vmem [shape: bf16[16,32], index: 0, kind: input, shape index: {}]
  %s1 = inlined_call_operand.vmem [shape: bf16[32,32], index: 1, kind: input, shape index: {}]
  %s2 = inlined_call_operand.vmem [shape: bf16[32,8], index: 2, kind: input, shape index: {}]
  %s3 = inlined_call_operand.vmem [shape: f32[16,16], index: 3, kind: input, shape index: {}]
  %s4 = inlined_call_operand.hbm [shape: f32[16,8], index: 4, kind: output, shape index: {}]
  %s5 = sld [smem:[#allocation0]]
  $region26: #{head_apply.1} parent=0
    _
  %s7 = ssub.s32 1, %s5
  %s8 = scalar_select 0, %s7, %s5
  $region1: #{head_apply.1} parent=0
    #allocation2 [shape = 'u8[8192]{0}', space=vmem, size = 0x2000, scoped, tag = 'output window, operand 0, single buffered']
    #allocation3 [shape = 's32[1]{0}', space=sflag, size = 0x4, scoped, tag = 'scoped memory for head_apply.1']
    %9 = vsyncpa [#allocation3], 0
    // Predicated region
    $region2: #{head_apply.1} parent=1 // pred_check
      _
    $region3: #{head_apply.1} parent=1 // pred_check_branch
      %11 = sbr.rel (0) target = $region5
    $region4: #{head_apply.1} parent=1 // pred_region
      _
    $region5: #{head_apply.1} parent=1 // pred_fallthru
      _
    // Predicated region
    $region6: #{head_apply.1} parent=1 // pred_check
      _
    $region7: #{head_apply.1} parent=1 // pred_check_branch
      %13 = sbr.rel (0) target = $region9
    $region8: #{head_apply.1} parent=1 // pred_region
      _
    $region9: #{head_apply.1} parent=1 // pred_fallthru
      _
    // Predicated region
    $region10: #{head_apply.1} parent=1 // pred_check
      _
    $region11: #{head_apply.1} parent=1 // pred_check_branch
      %15 = sbr.rel (0) target = $region13
    $region12: #{head_apply.1} parent=1 // pred_region
      _
    $region13: #{head_apply.1} parent=1 // pred_fallthru
      _
    // Predicated region
    $region14: #{head_apply.1} parent=1 // pred_check
      _
    $region15: #{head_apply.1} parent=1 // pred_check_branch
      %17 = sbr.rel (0) target = $region17
    $region16: #{head_apply.1} parent=1 // pred_region
      _
    $region17: #{head_apply.1} parent=1 // pred_fallthru
      _
    %v19 = vld [vmem:[%s0] sm:$0xf]
    %v20 = vld [vmem:[%s0 + $0x4] sm:$0xf]
    %v21 = vld [vmem:[%s1] sm:$0xf]
    %v22 = vld [vmem:[%s1 + $0x4] sm:$0xf]
    %v23 = vld [vmem:[%s1 + $0x8] sm:$0xf]
    %v24 = vld [vmem:[%s1 + $0xc] sm:$0xf]
    %v27 = vunpack.c.l.b16 %v19
    %v28 = vunpack.c.l.b16 %v20
    %v29 = vpack.c.b16 %v28, %v27
    %v34 = vunpack.c.l.b16 %v21
    %v35 = vunpack.c.l.b16 %v22
    %v36 = vunpack.c.l.b16 %v23
    %v37 = vunpack.c.l.b16 %v24
    %v38 = vpack.c.b16 %v35, %v34
    %v39 = vpack.c.b16 %v37, %v36
    %vm42 = vcmask 261120
    %v44 = vsel %vm42, %v29, 0
    %46 = vmatprep.subr.bf16.mxu0 0
    %47 = vmatpush1.bf16.msra.mxu0 0
    %48 = vmatprep.subr.bf16.mxu0 0
    %49 = vmatpush1.bf16.msra.mxu0 0
    %50 = vmatprep.subr.bf16.mxu0 0
    %51 = vmatpush1.bf16.msra.mxu0 0
    %52 = vmatprep.subr.bf16.mxu0 0
    %53 = vmatpush1.bf16.msra.mxu0 0
    %54 = vmatprep.subr.bf16.mxu0 0
    %55 = vmatpush1.bf16.msra.mxu0 0
    %56 = vmatprep.subr.bf16.mxu0 0
    %57 = vmatpush1.bf16.msra.mxu0 0
    %58 = vmatprep.subr.bf16.mxu0 0
    %59 = vmatpush1.bf16.msra.mxu0 %v39
    %60 = vmatprep.subr.bf16.mxu0 0
    %61 = vmatpush1.bf16.msra.mxu0 %v38
    %62 = vmatprep.subr.bf16.mxu0 0
    %63 = vmatpush2.bf16.msra.mxu0 0
    %64 = vmatprep.subr.bf16.mxu0 0
    %65 = vmatpush2.bf16.msra.mxu0 0
    %66 = vmatprep.subr.bf16.mxu0 0
    %67 = vmatpush2.bf16.msra.mxu0 0
    %68 = vmatprep.subr.bf16.mxu0 0
    %69 = vmatpush2.bf16.msra.mxu0 0
    %70 = vmatprep.subr.bf16.mxu0 0
    %71 = vmatpush2.bf16.msra.mxu0 0
    %72 = vmatprep.subr.bf16.mxu0 0
    %73 = vmatpush2.bf16.msra.mxu0 0
    %74 = vmatprep.subr.bf16.mxu0 0
    %75 = vmatpush2.bf16.msra.mxu0 0
    %76 = vmatprep.subr.bf16.mxu0 0
    %77 = vmatpush2.bf16.msra.mxu0 0
    %78 = vmatprep.mubr.bf16.mxu0 0
    %79 = vmatmul.mubr.bf16.gmra.mxu0 %v44
    %v80 = vpop.f32.mrf.mxu0
    %v81 = vadd.f32 0.0, %v80
    %v82 = vpop.f32.mrf.mxu0
    %v83 = vpop.f32.mrf.mxu0
    %v84 = vadd.f32 0.0, %v83
    %v85 = vpop.f32.mrf.mxu0
    %86 = vdwg.mxu0
    %v87 = vpack.c.bf16 %v84, %v81
    %v88 = vld [vmem:[%s3] sm:$0xff]
    %v89 = vld [vmem:[%s3 + $0x8] sm:$0xff]
    %v91 = vsel %vm42, %v87, 0
    %93 = vmatprep.subr.bf16.mxu0 0
    %94 = vmatpush1.bf16.xpose.msra.mxu0 0
    %95 = vmatprep.subr.bf16.mxu0 0
    %96 = vmatpush1.bf16.xpose.msra.mxu0 0
    %97 = vmatprep.subr.bf16.mxu0 0
    %98 = vmatpush1.bf16.xpose.msra.mxu0 0
    %99 = vmatprep.subr.bf16.mxu0 0
    %100 = vmatpush1.bf16.xpose.msra.mxu0 0
    %101 = vmatprep.subr.bf16.mxu0 0
    %102 = vmatpush1.bf16.xpose.msra.mxu0 0
    %103 = vmatprep.subr.bf16.mxu0 0
    %104 = vmatpush1.bf16.xpose.msra.mxu0 0
    %105 = vmatprep.subr.bf16.mxu0 0
    %106 = vmatpush1.bf16.xpose.msra.mxu0 0
    %107 = vmatprep.subr.bf16.mxu0 0
    %108 = vmatpush1.bf16.xpose.msra.mxu0 %v44
    %109 = vmatprep.subr.bf16.mxu0 0
    %110 = vmatpush2.bf16.xpose.msra.mxu0 0
    %111 = vmatprep.subr.bf16.mxu0 0
    %112 = vmatpush2.bf16.xpose.msra.mxu0 0
    %113 = vmatprep.subr.bf16.mxu0 0
    %114 = vmatpush2.bf16.xpose.msra.mxu0 0
    %115 = vmatprep.subr.bf16.mxu0 0
    %116 = vmatpush2.bf16.xpose.msra.mxu0 0
    %117 = vmatprep.subr.bf16.mxu0 0
    %118 = vmatpush2.bf16.xpose.msra.mxu0 0
    %119 = vmatprep.subr.bf16.mxu0 0
    %120 = vmatpush2.bf16.xpose.msra.mxu0 0
    %121 = vmatprep.subr.bf16.mxu0 0
    %122 = vmatpush2.bf16.xpose.msra.mxu0 0
    %123 = vmatprep.subr.bf16.mxu0 0
    %124 = vmatpush2.bf16.xpose.msra.mxu0 0
    %125 = vmatprep.mubr.bf16.mxu0 0
    %126 = vmatmul.mubr.bf16.gmra.mxu0 %v91
    %v127 = vpop.f32.mrf.mxu0
    %v128 = vadd.f32 %v88, %v127
    %v129 = vpop.f32.mrf.mxu0
    %v130 = vpop.f32.mrf.mxu0
    %v131 = vadd.f32 %v89, %v130
    %v132 = vpop.f32.mrf.mxu0
    %133 = vdwg.mxu0
    %vm134 = vcmask 130048
    %v135 = vsel %vm134, %v128, -inf
    %136 = vmax.xlane.f32.xlu0 %v135
    %v137 = vpop.xlane.xlu0 %136
    %v138 = vsel %vm134, %v131, -inf
    %139 = vmax.xlane.f32.xlu0 %v138
    %v140 = vpop.xlane.xlu0 %139
    %v141 = vsub.f32 %v128, %v137
    %v142 = vsub.f32 %v131, %v140
    %v143 = vmul.f32 %v141, 1.442695
    %v144 = vpow.pop %v143
    %v145 = vmul.f32 %v142, 1.442695
    %v146 = vpow.pop %v145
    %v147 = vsel %vm134, %v144, 0.0
    %148 = vadd.xlane.f32.xlu0 %v147
    %v149 = vpop.xlane.xlu0 %148
    %v150 = vsel %vm134, %v146, 0.0
    %151 = vadd.xlane.f32.xlu0 %v150
    %v152 = vpop.xlane.xlu0 %151
    %v153 = vrcp.pop %v149
    %v154 = vrcp.pop %v152
    %v155 = vmul.f32 %v144, %v153
    %v156 = vmul.f32 %v146, %v154
    %v157 = vld [vmem:[%s2] sm:$0xf]
    %v158 = vld [vmem:[%s2 + $0x4] sm:$0xf]
    %v159 = vld [vmem:[%s2 + $0x8] sm:$0xf]
    %v160 = vld [vmem:[%s2 + $0xc] sm:$0xf]
    %v165 = vunpack.c.l.b16 %v157
    %v166 = vunpack.c.l.b16 %v158
    %v167 = vunpack.c.l.b16 %v159
    %v168 = vunpack.c.l.b16 %v160
    %v169 = vpack.c.b16 %v166, %v165
    %v170 = vpack.c.b16 %v168, %v167
    %173 = vmatprep.subr.bf16.mxu0 0
    %174 = vmatpush1.bf16.msra.mxu0 0
    %175 = vmatprep.subr.bf16.mxu0 0
    %176 = vmatpush1.bf16.msra.mxu0 0
    %177 = vmatprep.subr.bf16.mxu0 0
    %178 = vmatpush1.bf16.msra.mxu0 0
    %179 = vmatprep.subr.bf16.mxu0 0
    %180 = vmatpush1.bf16.msra.mxu0 0
    %181 = vmatprep.subr.bf16.mxu0 0
    %182 = vmatpush1.bf16.msra.mxu0 0
    %183 = vmatprep.subr.bf16.mxu0 0
    %184 = vmatpush1.bf16.msra.mxu0 0
    %185 = vmatprep.subr.bf16.mxu0 0
    %186 = vmatpush1.bf16.msra.mxu0 %v170
    %187 = vmatprep.subr.bf16.mxu0 0
    %188 = vmatpush1.bf16.msra.mxu0 %v169
    %189 = vmatprep.subr.bf16.mxu0 0
    %190 = vmatpush2.bf16.msra.mxu0 0
    %191 = vmatprep.subr.bf16.mxu0 0
    %192 = vmatpush2.bf16.msra.mxu0 0
    %193 = vmatprep.subr.bf16.mxu0 0
    %194 = vmatpush2.bf16.msra.mxu0 0
    %195 = vmatprep.subr.bf16.mxu0 0
    %196 = vmatpush2.bf16.msra.mxu0 0
    %197 = vmatprep.subr.bf16.mxu0 0
    %198 = vmatpush2.bf16.msra.mxu0 0
    %199 = vmatprep.subr.bf16.mxu0 0
    %200 = vmatpush2.bf16.msra.mxu0 0
    %201 = vmatprep.subr.bf16.mxu0 0
    %202 = vmatpush2.bf16.msra.mxu0 0
    %203 = vmatprep.subr.bf16.mxu0 0
    %204 = vmatpush2.bf16.msra.mxu0 0
    %205 = vmatprep.mubr.bf16.mxu0 0
    %206 = vmatmul.mubr.bf16.gmra.mxu0 %v44
    %v207 = vpop.f32.mrf.mxu0
    %v208 = vadd.f32 0.0, %v207
    %v209 = vpop.f32.mrf.mxu0
    %v210 = vpop.f32.mrf.mxu0
    %v211 = vadd.f32 0.0, %v210
    %v212 = vpop.f32.mrf.mxu0
    %213 = vdwg.mxu0
    %v214 = vpack.c.bf16 %v156, %v155
    %v215 = vpack.c.bf16 %v211, %v208
    %v217 = vsel %vm134, %v214, 0
    %219 = vmatprep.subr.bf16.mxu0 0
    %220 = vmatpush1.bf16.msra.mxu0 0
    %221 = vmatprep.subr.bf16.mxu0 0
    %222 = vmatpush1.bf16.msra.mxu0 0
    %223 = vmatprep.subr.bf16.mxu0 0
    %224 = vmatpush1.bf16.msra.mxu0 0
    %225 = vmatprep.subr.bf16.mxu0 0
    %226 = vmatpush1.bf16.msra.mxu0 0
    %227 = vmatprep.subr.bf16.mxu0 0
    %228 = vmatpush1.bf16.msra.mxu0 0
    %229 = vmatprep.subr.bf16.mxu0 0
    %230 = vmatpush1.bf16.msra.mxu0 0
    %231 = vmatprep.subr.bf16.mxu0 0
    %232 = vmatpush1.bf16.msra.mxu0 0
    %233 = vmatprep.subr.bf16.mxu0 0
    %234 = vmatpush1.bf16.msra.mxu0 %v215
    %235 = vmatprep.subr.bf16.mxu0 0
    %236 = vmatpush2.bf16.msra.mxu0 0
    %237 = vmatprep.subr.bf16.mxu0 0
    %238 = vmatpush2.bf16.msra.mxu0 0
    %239 = vmatprep.subr.bf16.mxu0 0
    %240 = vmatpush2.bf16.msra.mxu0 0
    %241 = vmatprep.subr.bf16.mxu0 0
    %242 = vmatpush2.bf16.msra.mxu0 0
    %243 = vmatprep.subr.bf16.mxu0 0
    %244 = vmatpush2.bf16.msra.mxu0 0
    %245 = vmatprep.subr.bf16.mxu0 0
    %246 = vmatpush2.bf16.msra.mxu0 0
    %247 = vmatprep.subr.bf16.mxu0 0
    %248 = vmatpush2.bf16.msra.mxu0 0
    %249 = vmatprep.subr.bf16.mxu0 0
    %250 = vmatpush2.bf16.msra.mxu0 0
    %251 = vmatprep.mubr.bf16.mxu0 0
    %252 = vmatmul.mubr.bf16.gmra.mxu0 %v217
    %v253 = vpop.f32.mrf.mxu0
    %v254 = vadd.f32 0.0, %v253
    %v255 = vpop.f32.mrf.mxu0
    %v256 = vpop.f32.mrf.mxu0
    %v257 = vadd.f32 0.0, %v256
    %v258 = vpop.f32.mrf.mxu0
    %259 = vdwg.mxu0
    %vm260 = vcmask 64512
    %261 = vst.msk [vmem:[#allocation2] sm:$0xff] %vm260, %v254
    %262 = vst.msk [vmem:[#allocation2 + $0x8] sm:$0xff] %vm260, %v257
    // Predicated region
    $region18: #{head_apply.1} parent=1 // pred_check
      _
    $region19: #{head_apply.1} parent=1 // pred_check_branch
      %264 = sbr.rel (0) target = $region21
    $region20: #{head_apply.1} parent=1 // pred_region
      %s266 = ssub.s32 256, 256
      %267 = vsyncadd [#allocation3], %s266
      %s268 = sshll.u32 [#allocation2], 4
      %s269 = int_to_ptr.vmem [resolvable:$true] %s268
      %274 = dma.vmem_to_hbm [thread:$0]  %s269, 256, %s4, [#allocation3], 128, 128, 8
    $region21: #{head_apply.1} parent=1 // pred_fallthru
      _
    // Predicated region
    $region22: #{head_apply.1} parent=1 // pred_check
      _
    $region23: #{head_apply.1} parent=1 // pred_check_branch
      %276 = sbr.rel (0) target = $region25
    $region24: #{head_apply.1} parent=1 // pred_region
      %277 = dma.done [#allocation3], 256
    $region25: #{head_apply.1} parent=1 // pred_fallthru
      _
    %278 = vsyncpa [#allocation3], 1

</llo_original>
